<compile_context>
chip_gen: v7x
topology: tpu7x:2x2x1
jax: 0.10.0
libtpu: 0.0.40
codegen_flags: <defaults>
</compile_context>

<pallas_src>
import jax
import jax.numpy as jnp
from jax.experimental import pallas as pl
from jax.experimental.pallas import tpu as pltpu


def _rup(x, m):
    return ((x + m - 1) // m) * m


def _dynamic_kernel(state_ref, action_ref,
                    ws1_ref, wa1_ref, ws2_ref, wa2_ref,
                    wm1_ref, wm2_ref, wm3_ref,
                    bs1_ref, ba1_ref, b2_ref, bm1_ref, bm2_ref, bm3_ref,
                    o_ref):
    """Fused forward pass for one batch tile. MXU matmuls, f32 accumulation."""
    f32 = jnp.float32
    cdt = ws1_ref.dtype                       # MXU compute dtype (bf16 by default)

    s_in = state_ref[...].astype(cdt)         # (TM, state_dim)
    a_in = action_ref[...].astype(cdt)        # (TM, action_dim)

    # Encoder layer 1 (state / action branches). Bias + ReLU in f32 on the VPU.
    h_s = jnp.dot(s_in, ws1_ref[...], preferred_element_type=f32)
    h_s = jnp.maximum(h_s + bs1_ref[...], 0.0)
    h_a = jnp.dot(a_in, wa1_ref[...], preferred_element_type=f32)
    h_a = jnp.maximum(h_a + ba1_ref[...], 0.0)

    # Encoder layer 2 + latent add. b2 = bs2 + ba2 folded at pack time; the two
    # matmuls accumulate straight into the latent sum (s + a).
    sa = (jnp.dot(h_s.astype(cdt), ws2_ref[...], preferred_element_type=f32)
          + jnp.dot(h_a.astype(cdt), wa2_ref[...], preferred_element_type=f32)
          + b2_ref[...])

    # model: Linear -> ReLU -> Linear -> ReLU -> Linear
    h1 = jnp.dot(sa.astype(cdt), wm1_ref[...], preferred_element_type=f32)
    h1 = jnp.maximum(h1 + bm1_ref[...], 0.0)
    h2 = jnp.dot(h1.astype(cdt), wm2_ref[...], preferred_element_type=f32)
    h2 = jnp.maximum(h2 + bm2_ref[...], 0.0)
    y = jnp.dot(h2.astype(cdt), wm3_ref[...], preferred_element_type=f32)
    o_ref[...] = (y + bm3_ref[...]).astype(o_ref.dtype)


def pack_params(params, compute_dtype=jnp.bfloat16):
    """Cast weights to the MXU compute dtype; keep biases f32; fold bs2+ba2.

    Returns the flat tuple of arrays consumed by `dynamic_forward`
    (7 weights, then 6 biases).
    """
    f32 = jnp.float32
    w = lambda name: params[name].astype(compute_dtype)
    b = lambda name: params[name].astype(f32).reshape(1, -1)
    weights = (w("ws1"), w("wa1"), w("ws2"), w("wa2"),
               w("wm1"), w("wm2"), w("wm3"))
    biases = (b("bs1"), b("ba1"),
              (params["bs2"] + params["ba2"]).astype(f32).reshape(1, -1),
              b("bm1"), b("bm2"), b("bm3"))
    return weights + biases


def dynamic_forward(state, action, packed, *, tm_cap=256):
    """`dynamic.forward(state, action)` as one fused Pallas call.

    tm_cap is the max batch tile (sweepable; 256 default is safe on v5e;
    512/1024 are worth trying on v6e/v7x for large batches).
    """
    batch, state_dim = state.shape
    action_dim = action.shape[1]
    out_dim = packed[6].shape[1]              # wm3: (hidden, out_dim)

    # Batch tiling: >= 2 tiles once there is enough work (keeps both v7x
    # TensorCores busy); tile size derived from the batch so the last tile
    # is not mostly padding.
    b8 = _rup(max(batch, 1), 8)
    n_tiles = max(pl.cdiv(b8, tm_cap), 2 if b8 >= 16 else 1)
    tm = _rup(pl.cdiv(b8, n_tiles), 8)
    b_pad = tm * n_tiles

    if b_pad != batch:                        # row padding only (no lane padding)
        pad = ((0, b_pad - batch), (0, 0))
        state = jnp.pad(state, pad)
        action = jnp.pad(action, pad)

    # Weights/biases: whole arrays resident in VMEM, single-buffered.
    resident = pl.BlockSpec(memory_space=pltpu.MemorySpace.VMEM)

    out = pl.pallas_call(
        _dynamic_kernel,
        out_shape=jax.ShapeDtypeStruct((b_pad, out_dim), jnp.float32),
        grid_spec=pltpu.PrefetchScalarGridSpec(
            num_scalar_prefetch=0,
            grid=(n_tiles,),
            in_specs=[
                pl.BlockSpec((tm, state_dim), lambda i: (i, 0)),   # batch tile
                pl.BlockSpec((tm, action_dim), lambda i: (i, 0)),  # batch tile
            ] + [resident] * len(packed),
            out_specs=pl.BlockSpec((tm, out_dim), lambda i: (i, 0)),
        ),
        compiler_params=pltpu.CompilerParams(
            dimension_semantics=("parallel",),   # megacore on v7x; harmless elsewhere
        ),
    )(state, action, *packed)

    return out if b_pad == batch else out[:batch]


def _init_linear(key, in_dim, out_dim):
    """PyTorch nn.Linear-style init: U(-1/sqrt(in), 1/sqrt(in))."""
    kw, kb = jax.random.split(key)
    bound = 1.0 / jnp.sqrt(jnp.float32(in_dim))
    w = jax.random.uniform(kw, (in_dim, out_dim), jnp.float32, -bound, bound)
    b = jax.random.uniform(kb, (1, out_dim), jnp.float32, -bound, bound)
    return w, b


def init_params(key, state_dim, action_dim, output_dim, hidden_size):
    ks = jax.random.split(key, 7)
    ws1, bs1 = _init_linear(ks[0], state_dim, hidden_size)
    ws2, bs2 = _init_linear(ks[1], hidden_size, 10)
    wa1, ba1 = _init_linear(ks[2], action_dim, hidden_size)
    wa2, ba2 = _init_linear(ks[3], hidden_size, 10)
    wm1, bm1 = _init_linear(ks[4], 10, hidden_size)
    wm2, bm2 = _init_linear(ks[5], hidden_size, hidden_size)
    wm3, bm3 = _init_linear(ks[6], hidden_size, output_dim)
    return dict(
        ws1=ws1, bs1=bs1, ws2=ws2, bs2=bs2,
        wa1=wa1, ba1=ba1, wa2=wa2, ba2=ba2,
        wm1=wm1, bm1=bm1, wm2=wm2, bm2=bm2, wm3=wm3, bm3=bm3,
    )


def reference_forward(state, action, p):
    relu = lambda v: jnp.maximum(v, 0.0)
    s = relu(state @ p["ws1"] + p["bs1"]) @ p["ws2"] + p["bs2"]
    a = relu(action @ p["wa1"] + p["ba1"]) @ p["wa2"] + p["ba2"]
    x = s + a
    x = relu(x @ p["wm1"] + p["bm1"])
    x = relu(x @ p["wm2"] + p["bm2"])
    return x @ p["wm3"] + p["bm3"]


if __name__ == "__main__":
    # Small shapes consistent with the module (Ant-like dims, shrunk hidden).
    batch, state_dim, action_dim, output_dim, hidden_size = 8, 16, 8, 16, 32

    key = jax.random.PRNGKey(0)
    k_params, k_state, k_action = jax.random.split(key, 3)

    params = init_params(k_params, state_dim, action_dim, output_dim, hidden_size)
    state = jax.random.normal(k_state, (batch, state_dim), jnp.float32)
    action = jax.random.normal(k_action, (batch, action_dim), jnp.float32)

    # Pack once (cached in a real deployment), then run the kernel.
    packed = pack_params(params)             # bf16 weights for the MXU
    out = dynamic_forward(state, action, packed)
    out = jax.block_until_ready(out)

    ref = reference_forward(state, action, params)
    assert out.shape == (batch, output_dim)
    err = float(jnp.max(jnp.abs(out - ref)))
    # bf16 matmul operands with f32 accumulation -> loosened tolerance.
    assert err < 3e-2, f"mismatch vs JAX reference: max abs err {err}"

    print("KERNEL_OK")
</pallas_src>

<mosaic_0001>
module attributes {stable_mosaic.version = 11 : i64} {
  func.func @_dynamic_kernel(%arg0: i32, %arg1: memref<8x16xf32, #tpu.memory_space<vmem>>, %arg2: memref<8x8xf32, #tpu.memory_space<vmem>>, %arg3: memref<16x32xbf16, #tpu.memory_space<vmem>>, %arg4: memref<8x32xbf16, #tpu.memory_space<vmem>>, %arg5: memref<32x10xbf16, #tpu.memory_space<vmem>>, %arg6: memref<32x10xbf16, #tpu.memory_space<vmem>>, %arg7: memref<10x32xbf16, #tpu.memory_space<vmem>>, %arg8: memref<32x32xbf16, #tpu.memory_space<vmem>>, %arg9: memref<32x16xbf16, #tpu.memory_space<vmem>>, %arg10: memref<1x32xf32, #tpu.memory_space<vmem>>, %arg11: memref<1x32xf32, #tpu.memory_space<vmem>>, %arg12: memref<1x10xf32, #tpu.memory_space<vmem>>, %arg13: memref<1x32xf32, #tpu.memory_space<vmem>>, %arg14: memref<1x32xf32, #tpu.memory_space<vmem>>, %arg15: memref<1x16xf32, #tpu.memory_space<vmem>>, %arg16: memref<8x16xf32, #tpu.memory_space<vmem>>) attributes {dimension_semantics = [#tpu.dimension_semantics<parallel>], iteration_bounds = array<i64: 1>, scalar_prefetch = 0 : i64, scratch_operands = 0 : i64, tpu.core_type = #tpu.core_type<tc>, window_params = [{transform_indices = @transform_0, window_bounds = array<i64: 8, 16>}, {transform_indices = @transform_1, window_bounds = array<i64: 8, 8>}, {pipeline_mode = #tpu.pipeline_mode<synchronous>, transform_indices = @transform_2, window_bounds = array<i64: 16, 32>}, {pipeline_mode = #tpu.pipeline_mode<synchronous>, transform_indices = @transform_3, window_bounds = array<i64: 8, 32>}, {pipeline_mode = #tpu.pipeline_mode<synchronous>, transform_indices = @transform_4, window_bounds = array<i64: 32, 10>}, {pipeline_mode = #tpu.pipeline_mode<synchronous>, transform_indices = @transform_5, window_bounds = array<i64: 32, 10>}, {pipeline_mode = #tpu.pipeline_mode<synchronous>, transform_indices = @transform_6, window_bounds = array<i64: 10, 32>}, {pipeline_mode = #tpu.pipeline_mode<synchronous>, transform_indices = @transform_7, window_bounds = array<i64: 32, 32>}, {pipeline_mode = #tpu.pipeline_mode<synchronous>, transform_indices = @transform_8, window_bounds = array<i64: 32, 16>}, {pipeline_mode = #tpu.pipeline_mode<synchronous>, transform_indices = @transform_9, window_bounds = array<i64: 1, 32>}, {pipeline_mode = #tpu.pipeline_mode<synchronous>, transform_indices = @transform_10, window_bounds = array<i64: 1, 32>}, {pipeline_mode = #tpu.pipeline_mode<synchronous>, transform_indices = @transform_11, window_bounds = array<i64: 1, 10>}, {pipeline_mode = #tpu.pipeline_mode<synchronous>, transform_indices = @transform_12, window_bounds = array<i64: 1, 32>}, {pipeline_mode = #tpu.pipeline_mode<synchronous>, transform_indices = @transform_13, window_bounds = array<i64: 1, 32>}, {pipeline_mode = #tpu.pipeline_mode<synchronous>, transform_indices = @transform_14, window_bounds = array<i64: 1, 16>}, {transform_indices = @transform_15, window_bounds = array<i64: 8, 16>}]} {
    %c0 = arith.constant 0 : index
    %c0_0 = arith.constant 0 : index
    %0 = vector.load %arg1[%c0, %c0_0] : memref<8x16xf32, #tpu.memory_space<vmem>>, vector<8x16xf32>
    %1 = arith.truncf %0 : vector<8x16xf32> to vector<8x16xbf16>
    %c0_1 = arith.constant 0 : index
    %c0_2 = arith.constant 0 : index
    %2 = vector.load %arg2[%c0_1, %c0_2] : memref<8x8xf32, #tpu.memory_space<vmem>>, vector<8x8xf32>
    %3 = arith.truncf %2 : vector<8x8xf32> to vector<8x8xbf16>
    %c0_3 = arith.constant 0 : index
    %c0_4 = arith.constant 0 : index
    %4 = vector.load %arg3[%c0_3, %c0_4] : memref<16x32xbf16, #tpu.memory_space<vmem>>, vector<16x32xbf16>
    %cst = arith.constant dense<0.000000e+00> : vector<8x32xf32>
    %5 = tpu.matmul %1, %4, %cst {dimension_numbers = #tpu.dot_dimension_numbers<[1], [0], [0], [1], [0, 0, 1, 1], [], []>} : vector<8x16xbf16>, vector<16x32xbf16>, vector<8x32xf32> -> vector<8x32xf32>
    %c0_5 = arith.constant 0 : index
    %c0_6 = arith.constant 0 : index
    %6 = vector.load %arg10[%c0_5, %c0_6] : memref<1x32xf32, #tpu.memory_space<vmem>>, vector<1x32xf32>
    %7 = vector.broadcast %6 : vector<1x32xf32> to vector<8x32xf32>
    %8 = arith.addf %5, %7 : vector<8x32xf32>
    %cst_7 = arith.constant 0.000000e+00 : f32
    %9 = vector.broadcast %cst_7 : f32 to vector<8x32xf32>
    %10 = arith.maximumf %8, %9 : vector<8x32xf32>
    %c0_8 = arith.constant 0 : index
    %c0_9 = arith.constant 0 : index
    %11 = vector.load %arg4[%c0_8, %c0_9] : memref<8x32xbf16, #tpu.memory_space<vmem>>, vector<8x32xbf16>
    %cst_10 = arith.constant dense<0.000000e+00> : vector<8x32xf32>
    %12 = tpu.matmul %3, %11, %cst_10 {dimension_numbers = #tpu.dot_dimension_numbers<[1], [0], [0], [1], [0, 0, 1, 1], [], []>} : vector<8x8xbf16>, vector<8x32xbf16>, vector<8x32xf32> -> vector<8x32xf32>
    %c0_11 = arith.constant 0 : index
    %c0_12 = arith.constant 0 : index
    %13 = vector.load %arg11[%c0_11, %c0_12] : memref<1x32xf32, #tpu.memory_space<vmem>>, vector<1x32xf32>
    %14 = vector.broadcast %13 : vector<1x32xf32> to vector<8x32xf32>
    %15 = arith.addf %12, %14 : vector<8x32xf32>
    %cst_13 = arith.constant 0.000000e+00 : f32
    %16 = vector.broadcast %cst_13 : f32 to vector<8x32xf32>
    %17 = arith.maximumf %15, %16 : vector<8x32xf32>
    %18 = arith.truncf %10 : vector<8x32xf32> to vector<8x32xbf16>
    %c0_14 = arith.constant 0 : index
    %c0_15 = arith.constant 0 : index
    %19 = vector.load %arg5[%c0_14, %c0_15] : memref<32x10xbf16, #tpu.memory_space<vmem>>, vector<32x10xbf16>
    %cst_16 = arith.constant dense<0.000000e+00> : vector<8x10xf32>
    %20 = tpu.matmul %18, %19, %cst_16 {dimension_numbers = #tpu.dot_dimension_numbers<[1], [0], [0], [1], [0, 0, 1, 1], [], []>} : vector<8x32xbf16>, vector<32x10xbf16>, vector<8x10xf32> -> vector<8x10xf32>
    %21 = arith.truncf %17 : vector<8x32xf32> to vector<8x32xbf16>
    %c0_17 = arith.constant 0 : index
    %c0_18 = arith.constant 0 : index
    %22 = vector.load %arg6[%c0_17, %c0_18] : memref<32x10xbf16, #tpu.memory_space<vmem>>, vector<32x10xbf16>
    %cst_19 = arith.constant dense<0.000000e+00> : vector<8x10xf32>
    %23 = tpu.matmul %21, %22, %cst_19 {dimension_numbers = #tpu.dot_dimension_numbers<[1], [0], [0], [1], [0, 0, 1, 1], [], []>} : vector<8x32xbf16>, vector<32x10xbf16>, vector<8x10xf32> -> vector<8x10xf32>
    %24 = arith.addf %20, %23 : vector<8x10xf32>
    %c0_20 = arith.constant 0 : index
    %c0_21 = arith.constant 0 : index
    %25 = vector.load %arg12[%c0_20, %c0_21] : memref<1x10xf32, #tpu.memory_space<vmem>>, vector<1x10xf32>
    %26 = vector.broadcast %25 : vector<1x10xf32> to vector<8x10xf32>
    %27 = arith.addf %24, %26 : vector<8x10xf32>
    %28 = arith.truncf %27 : vector<8x10xf32> to vector<8x10xbf16>
    %c0_22 = arith.constant 0 : index
    %c0_23 = arith.constant 0 : index
    %29 = vector.load %arg7[%c0_22, %c0_23] : memref<10x32xbf16, #tpu.memory_space<vmem>>, vector<10x32xbf16>
    %cst_24 = arith.constant dense<0.000000e+00> : vector<8x32xf32>
    %30 = tpu.matmul %28, %29, %cst_24 {dimension_numbers = #tpu.dot_dimension_numbers<[1], [0], [0], [1], [0, 0, 1, 1], [], []>} : vector<8x10xbf16>, vector<10x32xbf16>, vector<8x32xf32> -> vector<8x32xf32>
    %c0_25 = arith.constant 0 : index
    %c0_26 = arith.constant 0 : index
    %31 = vector.load %arg13[%c0_25, %c0_26] : memref<1x32xf32, #tpu.memory_space<vmem>>, vector<1x32xf32>
    %32 = vector.broadcast %31 : vector<1x32xf32> to vector<8x32xf32>
    %33 = arith.addf %30, %32 : vector<8x32xf32>
    %cst_27 = arith.constant 0.000000e+00 : f32
    %34 = vector.broadcast %cst_27 : f32 to vector<8x32xf32>
    %35 = arith.maximumf %33, %34 : vector<8x32xf32>
    %36 = arith.truncf %35 : vector<8x32xf32> to vector<8x32xbf16>
    %c0_28 = arith.constant 0 : index
    %c0_29 = arith.constant 0 : index
    %37 = vector.load %arg8[%c0_28, %c0_29] : memref<32x32xbf16, #tpu.memory_space<vmem>>, vector<32x32xbf16>
    %cst_30 = arith.constant dense<0.000000e+00> : vector<8x32xf32>
    %38 = tpu.matmul %36, %37, %cst_30 {dimension_numbers = #tpu.dot_dimension_numbers<[1], [0], [0], [1], [0, 0, 1, 1], [], []>} : vector<8x32xbf16>, vector<32x32xbf16>, vector<8x32xf32> -> vector<8x32xf32>
    %c0_31 = arith.constant 0 : index
    %c0_32 = arith.constant 0 : index
    %39 = vector.load %arg14[%c0_31, %c0_32] : memref<1x32xf32, #tpu.memory_space<vmem>>, vector<1x32xf32>
    %40 = vector.broadcast %39 : vector<1x32xf32> to vector<8x32xf32>
    %41 = arith.addf %38, %40 : vector<8x32xf32>
    %cst_33 = arith.constant 0.000000e+00 : f32
    %42 = vector.broadcast %cst_33 : f32 to vector<8x32xf32>
    %43 = arith.maximumf %41, %42 : vector<8x32xf32>
    %44 = arith.truncf %43 : vector<8x32xf32> to vector<8x32xbf16>
    %c0_34 = arith.constant 0 : index
    %c0_35 = arith.constant 0 : index
    %45 = vector.load %arg9[%c0_34, %c0_35] : memref<32x16xbf16, #tpu.memory_space<vmem>>, vector<32x16xbf16>
    %cst_36 = arith.constant dense<0.000000e+00> : vector<8x16xf32>
    %46 = tpu.matmul %44, %45, %cst_36 {dimension_numbers = #tpu.dot_dimension_numbers<[1], [0], [0], [1], [0, 0, 1, 1], [], []>} : vector<8x32xbf16>, vector<32x16xbf16>, vector<8x16xf32> -> vector<8x16xf32>
    %c0_37 = arith.constant 0 : index
    %c0_38 = arith.constant 0 : index
    %47 = vector.load %arg15[%c0_37, %c0_38] : memref<1x16xf32, #tpu.memory_space<vmem>>, vector<1x16xf32>
    %48 = vector.broadcast %47 : vector<1x16xf32> to vector<8x16xf32>
    %49 = arith.addf %46, %48 : vector<8x16xf32>
    %c0_39 = arith.constant 0 : index
    %c0_40 = arith.constant 0 : index
    %50 = vector.load %arg16[%c0_39, %c0_40] : memref<8x16xf32, #tpu.memory_space<vmem>>, vector<8x16xf32>
    tpu.vector_store %arg16[%c0_39, %c0_40], %49 {strides = array<i32>} : memref<8x16xf32, #tpu.memory_space<vmem>>, vector<8x16xf32>,
    return
  }
  func.func @transform_0(%arg0: i32) -> (i32, i32) {
    %c0_i32 = arith.constant 0 : i32
    %c0_i32_0 = arith.constant 0 : i32
    return %arg0, %c0_i32 : i32, i32
  }
  func.func @transform_1(%arg0: i32) -> (i32, i32) {
    %c0_i32 = arith.constant 0 : i32
    %c0_i32_0 = arith.constant 0 : i32
    return %arg0, %c0_i32 : i32, i32
  }
  func.func @transform_2(%arg0: i32) -> (i32, i32) {
    %c0_i32 = arith.constant 0 : i32
    %c0_i32_0 = arith.constant 0 : i32
    %c0_i32_1 = arith.constant 0 : i32
    return %c0_i32, %c0_i32_0 : i32, i32
  }
  func.func @transform_3(%arg0: i32) -> (i32, i32) {
    %c0_i32 = arith.constant 0 : i32
    %c0_i32_0 = arith.constant 0 : i32
    %c0_i32_1 = arith.constant 0 : i32
    return %c0_i32, %c0_i32_0 : i32, i32
  }
  func.func @transform_4(%arg0: i32) -> (i32, i32) {
    %c0_i32 = arith.constant 0 : i32
    %c0_i32_0 = arith.constant 0 : i32
    %c0_i32_1 = arith.constant 0 : i32
    return %c0_i32, %c0_i32_0 : i32, i32
  }
  func.func @transform_5(%arg0: i32) -> (i32, i32) {
    %c0_i32 = arith.constant 0 : i32
    %c0_i32_0 = arith.constant 0 : i32
    %c0_i32_1 = arith.constant 0 : i32
    return %c0_i32, %c0_i32_0 : i32, i32
  }
  func.func @transform_6(%arg0: i32) -> (i32, i32) {
    %c0_i32 = arith.constant 0 : i32
    %c0_i32_0 = arith.constant 0 : i32
    %c0_i32_1 = arith.constant 0 : i32
    return %c0_i32, %c0_i32_0 : i32, i32
  }
  func.func @transform_7(%arg0: i32) -> (i32, i32) {
    %c0_i32 = arith.constant 0 : i32
    %c0_i32_0 = arith.constant 0 : i32
    %c0_i32_1 = arith.constant 0 : i32
    return %c0_i32, %c0_i32_0 : i32, i32
  }
  func.func @transform_8(%arg0: i32) -> (i32, i32) {
    %c0_i32 = arith.constant 0 : i32
    %c0_i32_0 = arith.constant 0 : i32
    %c0_i32_1 = arith.constant 0 : i32
    return %c0_i32, %c0_i32_0 : i32, i32
  }
  func.func @transform_9(%arg0: i32) -> (i32, i32) {
    %c0_i32 = arith.constant 0 : i32
    %c0_i32_0 = arith.constant 0 : i32
    %c0_i32_1 = arith.constant 0 : i32
    return %c0_i32, %c0_i32_0 : i32, i32
  }
  func.func @transform_10(%arg0: i32) -> (i32, i32) {
    %c0_i32 = arith.constant 0 : i32
    %c0_i32_0 = arith.constant 0 : i32
    %c0_i32_1 = arith.constant 0 : i32
    return %c0_i32, %c0_i32_0 : i32, i32
  }
  func.func @transform_11(%arg0: i32) -> (i32, i32) {
    %c0_i32 = arith.constant 0 : i32
    %c0_i32_0 = arith.constant 0 : i32
    %c0_i32_1 = arith.constant 0 : i32
    return %c0_i32, %c0_i32_0 : i32, i32
  }
  func.func @transform_12(%arg0: i32) -> (i32, i32) {
    %c0_i32 = arith.constant 0 : i32
    %c0_i32_0 = arith.constant 0 : i32
    %c0_i32_1 = arith.constant 0 : i32
    return %c0_i32, %c0_i32_0 : i32, i32
  }
  func.func @transform_13(%arg0: i32) -> (i32, i32) {
    %c0_i32 = arith.constant 0 : i32
    %c0_i32_0 = arith.constant 0 : i32
    %c0_i32_1 = arith.constant 0 : i32
    return %c0_i32, %c0_i32_0 : i32, i32
  }
  func.func @transform_14(%arg0: i32) -> (i32, i32) {
    %c0_i32 = arith.constant 0 : i32
    %c0_i32_0 = arith.constant 0 : i32
    %c0_i32_1 = arith.constant 0 : i32
    return %c0_i32, %c0_i32_0 : i32, i32
  }
  func.func @transform_15(%arg0: i32) -> (i32, i32) {
    %c0_i32 = arith.constant 0 : i32
    %c0_i32_0 = arith.constant 0 : i32
    return %arg0, %c0_i32 : i32, i32
  }
}

</mosaic_0001>

<llo_original>
// kernel: tpu_custom_call.1
$region0: #{tpu_custom_call.1}
  #allocation0 [shape = 'u32[]', space=smem, size = 0x4, offset = 0x4, fixed_abs, tag = 'smem constant byte address 0x4 - core index']
  #allocation1 [shape = 'u32[144,128]{1,0:T(1,128)}', space=vmem, size = 0x12000, scoped, tag = 'internal scratch']
  %s0 = inlined_call_operand.vmem [shape: f32[8,16], index: 0, kind: input, shape index: {}]
  %s1 = inlined_call_operand.vmem [shape: f32[8,8], index: 1, kind: input, shape index: {}]
  %s2 = inlined_call_operand.vmem [shape: bf16[16,32], index: 2, kind: input, shape index: {}]
  %s3 = inlined_call_operand.vmem [shape: bf16[8,32], index: 3, kind: input, shape index: {}]
  %s4 = inlined_call_operand.vmem [shape: bf16[32,10], index: 4, kind: input, shape index: {}]
  %s5 = inlined_call_operand.vmem [shape: bf16[32,10], index: 5, kind: input, shape index: {}]
  %s6 = inlined_call_operand.vmem [shape: bf16[10,32], index: 6, kind: input, shape index: {}]
  %s7 = inlined_call_operand.vmem [shape: bf16[32,32], index: 7, kind: input, shape index: {}]
  %s8 = inlined_call_operand.vmem [shape: bf16[32,16], index: 8, kind: input, shape index: {}]
  %s9 = inlined_call_operand.vmem [shape: f32[1,32], index: 9, kind: input, shape index: {}]
  %s10 = inlined_call_operand.vmem [shape: f32[1,32], index: 10, kind: input, shape index: {}]
  %s11 = inlined_call_operand.vmem [shape: f32[1,10], index: 11, kind: input, shape index: {}]
  %s12 = inlined_call_operand.vmem [shape: f32[1,32], index: 12, kind: input, shape index: {}]
  %s13 = inlined_call_operand.vmem [shape: f32[1,32], index: 13, kind: input, shape index: {}]
  %s14 = inlined_call_operand.vmem [shape: f32[1,16], index: 14, kind: input, shape index: {}]
  %s15 = inlined_call_operand.hbm [shape: f32[8,16], index: 15, kind: output, shape index: {}]
  %s16 = sld [smem:[#allocation0]]
  $region70: #{tpu_custom_call.1} parent=0
    _
  %s18 = ssub.s32 1, %s16
  %s19 = scalar_select 0, %s18, %s16
  $region1: #{tpu_custom_call.1} parent=0
    #allocation2 [shape = 'u8[4096]{0}', space=vmem, size = 0x1000, scoped, tag = 'output window, operand 0, single buffered']
    #allocation3 [shape = 's32[1]{0}', space=sflag, size = 0x4, scoped, tag = 'scoped memory for tpu_custom_call.1']
    %20 = vsyncpa [#allocation3], 0
    // Predicated region
    $region2: #{tpu_custom_call.1} parent=1 // pred_check
      _
    $region3: #{tpu_custom_call.1} parent=1 // pred_check_branch
      %22 = sbr.rel (0) target = $region5
    $region4: #{tpu_custom_call.1} parent=1 // pred_region
      _
    $region5: #{tpu_custom_call.1} parent=1 // pred_fallthru
      _
    // Predicated region
    $region6: #{tpu_custom_call.1} parent=1 // pred_check
      _
    $region7: #{tpu_custom_call.1} parent=1 // pred_check_branch
      %24 = sbr.rel (0) target = $region9
    $region8: #{tpu_custom_call.1} parent=1 // pred_region
      _
    $region9: #{tpu_custom_call.1} parent=1 // pred_fallthru
      _
    // Predicated region
    $region10: #{tpu_custom_call.1} parent=1 // pred_check
      _
    $region11: #{tpu_custom_call.1} parent=1 // pred_check_branch
      %26 = sbr.rel (0) target = $region13
    $region12: #{tpu_custom_call.1} parent=1 // pred_region
      _
    $region13: #{tpu_custom_call.1} parent=1 // pred_fallthru
      _
    // Predicated region
    $region14: #{tpu_custom_call.1} parent=1 // pred_check
      _
    $region15: #{tpu_custom_call.1} parent=1 // pred_check_branch
      %28 = sbr.rel (0) target = $region17
    $region16: #{tpu_custom_call.1} parent=1 // pred_region
      _
    $region17: #{tpu_custom_call.1} parent=1 // pred_fallthru
      _
    // Predicated region
    $region18: #{tpu_custom_call.1} parent=1 // pred_check
      _
    $region19: #{tpu_custom_call.1} parent=1 // pred_check_branch
      %30 = sbr.rel (0) target = $region21
    $region20: #{tpu_custom_call.1} parent=1 // pred_region
      _
    $region21: #{tpu_custom_call.1} parent=1 // pred_fallthru
      _
    // Predicated region
    $region22: #{tpu_custom_call.1} parent=1 // pred_check
      _
    $region23: #{tpu_custom_call.1} parent=1 // pred_check_branch
      %32 = sbr.rel (0) target = $region25
    $region24: #{tpu_custom_call.1} parent=1 // pred_region
      _
    $region25: #{tpu_custom_call.1} parent=1 // pred_fallthru
      _
    // Predicated region
    $region26: #{tpu_custom_call.1} parent=1 // pred_check
      _
    $region27: #{tpu_custom_call.1} parent=1 // pred_check_branch
      %34 = sbr.rel (0) target = $region29
    $region28: #{tpu_custom_call.1} parent=1 // pred_region
      _
    $region29: #{tpu_custom_call.1} parent=1 // pred_fallthru
      _
    // Predicated region
    $region30: #{tpu_custom_call.1} parent=1 // pred_check
      _
    $region31: #{tpu_custom_call.1} parent=1 // pred_check_branch
      %36 = sbr.rel (0) target = $region33
    $region32: #{tpu_custom_call.1} parent=1 // pred_region
      _
    $region33: #{tpu_custom_call.1} parent=1 // pred_fallthru
      _
    // Predicated region
    $region34: #{tpu_custom_call.1} parent=1 // pred_check
      _
    $region35: #{tpu_custom_call.1} parent=1 // pred_check_branch
      %38 = sbr.rel (0) target = $region37
    $region36: #{tpu_custom_call.1} parent=1 // pred_region
      _
    $region37: #{tpu_custom_call.1} parent=1 // pred_fallthru
      _
    // Predicated region
    $region38: #{tpu_custom_call.1} parent=1 // pred_check
      _
    $region39: #{tpu_custom_call.1} parent=1 // pred_check_branch
      %40 = sbr.rel (0) target = $region41
    $region40: #{tpu_custom_call.1} parent=1 // pred_region
      _
    $region41: #{tpu_custom_call.1} parent=1 // pred_fallthru
      _
    // Predicated region
    $region42: #{tpu_custom_call.1} parent=1 // pred_check
      _
    $region43: #{tpu_custom_call.1} parent=1 // pred_check_branch
      %42 = sbr.rel (0) target = $region45
    $region44: #{tpu_custom_call.1} parent=1 // pred_region
      _
    $region45: #{tpu_custom_call.1} parent=1 // pred_fallthru
      _
    // Predicated region
    $region46: #{tpu_custom_call.1} parent=1 // pred_check
      _
    $region47: #{tpu_custom_call.1} parent=1 // pred_check_branch
      %44 = sbr.rel (0) target = $region49
    $region48: #{tpu_custom_call.1} parent=1 // pred_region
      _
    $region49: #{tpu_custom_call.1} parent=1 // pred_fallthru
      _
    // Predicated region
    $region50: #{tpu_custom_call.1} parent=1 // pred_check
      _
    $region51: #{tpu_custom_call.1} parent=1 // pred_check_branch
      %46 = sbr.rel (0) target = $region53
    $region52: #{tpu_custom_call.1} parent=1 // pred_region
      _
    $region53: #{tpu_custom_call.1} parent=1 // pred_fallthru
      _
    // Predicated region
    $region54: #{tpu_custom_call.1} parent=1 // pred_check
      _
    $region55: #{tpu_custom_call.1} parent=1 // pred_check_branch
      %48 = sbr.rel (0) target = $region57
    $region56: #{tpu_custom_call.1} parent=1 // pred_region
      _
    $region57: #{tpu_custom_call.1} parent=1 // pred_fallthru
      _
    // Predicated region
    $region58: #{tpu_custom_call.1} parent=1 // pred_check
      _
    $region59: #{tpu_custom_call.1} parent=1 // pred_check_branch
      %50 = sbr.rel (0) target = $region61
    $region60: #{tpu_custom_call.1} parent=1 // pred_region
      _
    $region61: #{tpu_custom_call.1} parent=1 // pred_fallthru
      _
    %v52 = vld [vmem:[%s0] sm:$0xff]
    %v53 = vpack.c.bf16 %v52, %v52
    %v54 = vld [vmem:[%s1] sm:$0xff]
    %v55 = vpack.c.bf16 %v54, %v54
    %v56 = vld [vmem:[%s2] sm:$0xf]
    %v57 = vld [vmem:[%s2 + $0x4] sm:$0xf]
    %v58 = vld [vmem:[%s9] sm:$0x1]
    %v60 = vlaneseq
    %v61 = vshrl.u32 %v60, 7
    %v62 = vsub.s32 0, %v61
    %v63 = vrot.slane %v58, %v62
    %v67 = vunpack.c.l.b16 %v56
    %v68 = vunpack.c.l.b16 %v57
    %v69 = vpack.c.b16 %v68, %v67
    %vm71 = vcmask 130048
    %v73 = vsel %vm71, %v53, 0
    %75 = vmatprep.subr.bf16.mxu0 0
    %76 = vmatpush1.bf16.msra.mxu0 %v69
    %77 = vmatprep.subr.bf16.mxu0 0
    %78 = vmatpush1.bf16.msra.mxu0 0
    %79 = vmatprep.subr.bf16.mxu0 0
    %80 = vmatpush1.bf16.msra.mxu0 0
    %81 = vmatprep.subr.bf16.mxu0 0
    %82 = vmatpush1.bf16.msra.mxu0 0
    %83 = vmatprep.subr.bf16.mxu0 0
    %84 = vmatpush1.bf16.msra.mxu0 0
    %85 = vmatprep.subr.bf16.mxu0 0
    %86 = vmatpush1.bf16.msra.mxu0 0
    %87 = vmatprep.subr.bf16.mxu0 0
    %88 = vmatpush1.bf16.msra.mxu0 0
    %89 = vmatprep.subr.bf16.mxu0 0
    %90 = vmatpush1.bf16.msra.mxu0 0
    %91 = vmatprep.subr.bf16.mxu0 0
    %92 = vmatpush1.bf16.msra.mxu0 0
    %93 = vmatprep.subr.bf16.mxu0 0
    %94 = vmatpush1.bf16.msra.mxu0 0
    %95 = vmatprep.subr.bf16.mxu0 0
    %96 = vmatpush1.bf16.msra.mxu0 0
    %97 = vmatprep.subr.bf16.mxu0 0
    %98 = vmatpush1.bf16.msra.mxu0 0
    %99 = vmatprep.subr.bf16.mxu0 0
    %100 = vmatpush1.bf16.msra.mxu0 0
    %101 = vmatprep.subr.bf16.mxu0 0
    %102 = vmatpush1.bf16.msra.mxu0 0
    %103 = vmatprep.subr.bf16.mxu0 0
    %104 = vmatpush1.bf16.msra.mxu0 0
    %105 = vmatprep.subr.bf16.mxu0 0
    %106 = vmatpush1.bf16.msra.mxu0 0
    %107 = vmatprep.mubr.bf16.mxu0 0
    %108 = vmatmul.mubr.bf16.gmra.mrb[0].mxu0 %v73
    %v109 = vpop.f32.mrb[0].mxu0
    %v110 = vadd.f32 %v63, %v109
    %v111 = vpop.f32.mrb[0].mxu0
    %v112 = vpop.f32.mrb[0].mxu0
    %v113 = vpop.f32.mrb[0].mxu0
    %114 = vdwg.mxu0
    %v115 = vmax.f32 %v110, 0.0
    %v116 = vld [vmem:[%s3] sm:$0xf]
    %v117 = vld [vmem:[%s10] sm:$0x1]
    %v119 = vlaneseq
    %v120 = vshrl.u32 %v119, 7
    %v121 = vsub.s32 0, %v120
    %v122 = vrot.slane %v117, %v121
    %vm124 = vcmask 64512
    %v126 = vsel %vm124, %v55, 0
    %vm128 = vcmask 1043456
    %v130 = vsel %vm128, %v116, 0
    %132 = vmatprep.subr.bf16.mxu0 0
    %133 = vmatpush1.bf16.msra.mxu0 %v130
    %134 = vmatprep.subr.bf16.mxu0 0
    %135 = vmatpush1.bf16.msra.mxu0 0
    %136 = vmatprep.subr.bf16.mxu0 0
    %137 = vmatpush1.bf16.msra.mxu0 0
    %138 = vmatprep.subr.bf16.mxu0 0
    %139 = vmatpush1.bf16.msra.mxu0 0
    %140 = vmatprep.subr.bf16.mxu0 0
    %141 = vmatpush1.bf16.msra.mxu0 0
    %142 = vmatprep.subr.bf16.mxu0 0
    %143 = vmatpush1.bf16.msra.mxu0 0
    %144 = vmatprep.subr.bf16.mxu0 0
    %145 = vmatpush1.bf16.msra.mxu0 0
    %146 = vmatprep.subr.bf16.mxu0 0
    %147 = vmatpush1.bf16.msra.mxu0 0
    %148 = vmatprep.subr.bf16.mxu0 0
    %149 = vmatpush1.bf16.msra.mxu0 0
    %150 = vmatprep.subr.bf16.mxu0 0
    %151 = vmatpush1.bf16.msra.mxu0 0
    %152 = vmatprep.subr.bf16.mxu0 0
    %153 = vmatpush1.bf16.msra.mxu0 0
    %154 = vmatprep.subr.bf16.mxu0 0
    %155 = vmatpush1.bf16.msra.mxu0 0
    %156 = vmatprep.subr.bf16.mxu0 0
    %157 = vmatpush1.bf16.msra.mxu0 0
    %158 = vmatprep.subr.bf16.mxu0 0
    %159 = vmatpush1.bf16.msra.mxu0 0
    %160 = vmatprep.subr.bf16.mxu0 0
    %161 = vmatpush1.bf16.msra.mxu0 0
    %162 = vmatprep.subr.bf16.mxu0 0
    %163 = vmatpush1.bf16.msra.mxu0 0
    %164 = vmatprep.mubr.bf16.mxu0 0
    %165 = vmatmul.mubr.bf16.gmra.mrb[0].mxu0 %v126
    %v166 = vpop.f32.mrb[0].mxu0
    %v167 = vadd.f32 %v122, %v166
    %v168 = vpop.f32.mrb[0].mxu0
    %v169 = vpop.f32.mrb[0].mxu0
    %v170 = vpop.f32.mrb[0].mxu0
    %171 = vdwg.mxu0
    %v172 = vmax.f32 %v167, 0.0
    %v173 = vpack.c.bf16 %v115, %v115
    %v174 = vld [vmem:[%s4] sm:$0xf]
    %v175 = vld [vmem:[%s4 + $0x4] sm:$0xf]
    %v176 = vld [vmem:[%s4 + $0x8] sm:$0xf]
    %v177 = vld [vmem:[%s4 + $0xc] sm:$0xf]
    %v178 = vpack.c.bf16 %v172, %v172
    %v179 = vld [vmem:[%s5] sm:$0xf]
    %v180 = vld [vmem:[%s5 + $0x4] sm:$0xf]
    %v181 = vld [vmem:[%s5 + $0x8] sm:$0xf]
    %v182 = vld [vmem:[%s5 + $0xc] sm:$0xf]
    %v187 = vunpack.c.l.b16 %v179
    %v188 = vunpack.c.l.b16 %v180
    %v189 = vunpack.c.l.b16 %v181
    %v190 = vunpack.c.l.b16 %v182
    %v191 = vpack.c.b16 %v188, %v187
    %v192 = vpack.c.b16 %v190, %v189
    %vm195 = vcmask 261120
    %v197 = vsel %vm195, %v178, 0
    %199 = vmatprep.subr.bf16.mxu0 0
    %200 = vmatpush1.bf16.msra.mxu0 %v191
    %201 = vmatprep.subr.bf16.mxu0 0
    %202 = vmatpush1.bf16.msra.mxu0 %v192
    %203 = vmatprep.subr.bf16.mxu0 0
    %204 = vmatpush1.bf16.msra.mxu0 0
    %205 = vmatprep.subr.bf16.mxu0 0
    %206 = vmatpush1.bf16.msra.mxu0 0
    %207 = vmatprep.subr.bf16.mxu0 0
    %208 = vmatpush1.bf16.msra.mxu0 0
    %209 = vmatprep.subr.bf16.mxu0 0
    %210 = vmatpush1.bf16.msra.mxu0 0
    %211 = vmatprep.subr.bf16.mxu0 0
    %212 = vmatpush1.bf16.msra.mxu0 0
    %213 = vmatprep.subr.bf16.mxu0 0
    %214 = vmatpush1.bf16.msra.mxu0 0
    %215 = vmatprep.subr.bf16.mxu0 0
    %216 = vmatpush1.bf16.msra.mxu0 0
    %217 = vmatprep.subr.bf16.mxu0 0
    %218 = vmatpush1.bf16.msra.mxu0 0
    %219 = vmatprep.subr.bf16.mxu0 0
    %220 = vmatpush1.bf16.msra.mxu0 0
    %221 = vmatprep.subr.bf16.mxu0 0
    %222 = vmatpush1.bf16.msra.mxu0 0
    %223 = vmatprep.subr.bf16.mxu0 0
    %224 = vmatpush1.bf16.msra.mxu0 0
    %225 = vmatprep.subr.bf16.mxu0 0
    %226 = vmatpush1.bf16.msra.mxu0 0
    %227 = vmatprep.subr.bf16.mxu0 0
    %228 = vmatpush1.bf16.msra.mxu0 0
    %229 = vmatprep.subr.bf16.mxu0 0
    %230 = vmatpush1.bf16.msra.mxu0 0
    %231 = vmatprep.mubr.bf16.mxu0 0
    %232 = vmatmul.mubr.bf16.gmra.mrb[0].mxu0 %v197
    %v233 = vpop.f32.mrb[0].mxu0
    %v234 = vadd.f32 0.0, %v233
    %v235 = vpop.f32.mrb[0].mxu0
    %v236 = vpop.f32.mrb[0].mxu0
    %v237 = vpop.f32.mrb[0].mxu0
    %238 = vdwg.mxu0
    %v243 = vunpack.c.l.b16 %v174
    %v244 = vunpack.c.l.b16 %v175
    %v245 = vunpack.c.l.b16 %v176
    %v246 = vunpack.c.l.b16 %v177
    %v247 = vpack.c.b16 %v244, %v243
    %v248 = vpack.c.b16 %v246, %v245
    %v252 = vsel %vm195, %v173, 0
    %254 = vmatprep.subr.bf16.mxu0 0
    %255 = vmatpush1.bf16.msra.mxu0 %v247
    %256 = vmatprep.subr.bf16.mxu0 0
    %257 = vmatpush1.bf16.msra.mxu0 %v248
    %258 = vmatprep.subr.bf16.mxu0 0
    %259 = vmatpush1.bf16.msra.mxu0 0
    %260 = vmatprep.subr.bf16.mxu0 0
    %261 = vmatpush1.bf16.msra.mxu0 0
    %262 = vmatprep.subr.bf16.mxu0 0
    %263 = vmatpush1.bf16.msra.mxu0 0
    %264 = vmatprep.subr.bf16.mxu0 0
    %265 = vmatpush1.bf16.msra.mxu0 0
    %266 = vmatprep.subr.bf16.mxu0 0
    %267 = vmatpush1.bf16.msra.mxu0 0
    %268 = vmatprep.subr.bf16.mxu0 0
    %269 = vmatpush1.bf16.msra.mxu0 0
    %270 = vmatprep.subr.bf16.mxu0 0
    %271 = vmatpush1.bf16.msra.mxu0 0
    %272 = vmatprep.subr.bf16.mxu0 0
    %273 = vmatpush1.bf16.msra.mxu0 0
    %274 = vmatprep.subr.bf16.mxu0 0
    %275 = vmatpush1.bf16.msra.mxu0 0
    %276 = vmatprep.subr.bf16.mxu0 0
    %277 = vmatpush1.bf16.msra.mxu0 0
    %278 = vmatprep.subr.bf16.mxu0 0
    %279 = vmatpush1.bf16.msra.mxu0 0
    %280 = vmatprep.subr.bf16.mxu0 0
    %281 = vmatpush1.bf16.msra.mxu0 0
    %282 = vmatprep.subr.bf16.mxu0 0
    %283 = vmatpush1.bf16.msra.mxu0 0
    %284 = vmatprep.subr.bf16.mxu0 0
    %285 = vmatpush1.bf16.msra.mxu0 0
    %286 = vmatprep.mubr.bf16.mxu0 0
    %287 = vmatmul.mubr.bf16.gmra.mrb[0].mxu0 %v252
    %v288 = vpop.f32.mrb[0].mxu0
    %v289 = vadd.f32 %v234, %v288
    %v290 = vpop.f32.mrb[0].mxu0
    %v291 = vpop.f32.mrb[0].mxu0
    %v292 = vpop.f32.mrb[0].mxu0
    %293 = vdwg.mxu0
    %v294 = vld [vmem:[%s11] sm:$0x1]
    %v296 = vlaneseq
    %v297 = vshrl.u32 %v296, 7
    %v298 = vsub.s32 0, %v297
    %v299 = vrot.slane %v294, %v298
    %v301 = vadd.f32 %v289, %v299
    %v302 = vpack.c.bf16 %v301, %v301
    %v303 = vld [vmem:[%s6] sm:$0xf]
    %v304 = vld [vmem:[%s6 + $0x4] sm:$0x1]
    %v305 = vld [vmem:[%s12] sm:$0x1]
    %v307 = vlaneseq
    %v308 = vshrl.u32 %v307, 7
    %v309 = vsub.s32 0, %v308
    %v310 = vrot.slane %v305, %v309
    %v314 = vunpack.c.l.b16 %v303
    %v315 = vunpack.c.l.b16 %v304
    %v316 = vpack.c.b16 %v315, %v314
    %vm317 = vcmask 80896
    %v319 = vsel %vm317, %v302, 0
    %vm321 = vcmask 1044480
    %v323 = vsel %vm321, %v316, 0
    %325 = vmatprep.subr.bf16.mxu0 0
    %326 = vmatpush1.bf16.msra.mxu0 %v323
    %327 = vmatprep.subr.bf16.mxu0 0
    %328 = vmatpush1.bf16.msra.mxu0 0
    %329 = vmatprep.subr.bf16.mxu0 0
    %330 = vmatpush1.bf16.msra.mxu0 0
    %331 = vmatprep.subr.bf16.mxu0 0
    %332 = vmatpush1.bf16.msra.mxu0 0
    %333 = vmatprep.subr.bf16.mxu0 0
    %334 = vmatpush1.bf16.msra.mxu0 0
    %335 = vmatprep.subr.bf16.mxu0 0
    %336 = vmatpush1.bf16.msra.mxu0 0
    %337 = vmatprep.subr.bf16.mxu0 0
    %338 = vmatpush1.bf16.msra.mxu0 0
    %339 = vmatprep.subr.bf16.mxu0 0
    %340 = vmatpush1.bf16.msra.mxu0 0
    %341 = vmatprep.subr.bf16.mxu0 0
    %342 = vmatpush1.bf16.msra.mxu0 0
    %343 = vmatprep.subr.bf16.mxu0 0
    %344 = vmatpush1.bf16.msra.mxu0 0
    %345 = vmatprep.subr.bf16.mxu0 0
    %346 = vmatpush1.bf16.msra.mxu0 0
    %347 = vmatprep.subr.bf16.mxu0 0
    %348 = vmatpush1.bf16.msra.mxu0 0
    %349 = vmatprep.subr.bf16.mxu0 0
    %350 = vmatpush1.bf16.msra.mxu0 0
    %351 = vmatprep.subr.bf16.mxu0 0
    %352 = vmatpush1.bf16.msra.mxu0 0
    %353 = vmatprep.subr.bf16.mxu0 0
    %354 = vmatpush1.bf16.msra.mxu0 0
    %355 = vmatprep.subr.bf16.mxu0 0
    %356 = vmatpush1.bf16.msra.mxu0 0
    %357 = vmatprep.mubr.bf16.mxu0 0
    %358 = vmatmul.mubr.bf16.gmra.mrb[0].mxu0 %v319
    %v359 = vpop.f32.mrb[0].mxu0
    %v360 = vadd.f32 %v310, %v359
    %v361 = vpop.f32.mrb[0].mxu0
    %v362 = vpop.f32.mrb[0].mxu0
    %v363 = vpop.f32.mrb[0].mxu0
    %364 = vdwg.mxu0
    %v365 = vmax.f32 %v360, 0.0
    %v366 = vpack.c.bf16 %v365, %v365
    %v367 = vld [vmem:[%s7] sm:$0xf]
    %v368 = vld [vmem:[%s7 + $0x4] sm:$0xf]
    %v369 = vld [vmem:[%s7 + $0x8] sm:$0xf]
    %v370 = vld [vmem:[%s7 + $0xc] sm:$0xf]
    %v371 = vld [vmem:[%s13] sm:$0x1]
    %v373 = vlaneseq
    %v374 = vshrl.u32 %v373, 7
    %v375 = vsub.s32 0, %v374
    %v376 = vrot.slane %v371, %v375
    %v382 = vunpack.c.l.b16 %v367
    %v383 = vunpack.c.l.b16 %v368
    %v384 = vunpack.c.l.b16 %v369
    %v385 = vunpack.c.l.b16 %v370
    %v386 = vpack.c.b16 %v383, %v382
    %v387 = vpack.c.b16 %v385, %v384
    %v391 = vsel %vm195, %v366, 0
    %393 = vmatprep.subr.bf16.mxu0 0
    %394 = vmatpush1.bf16.msra.mxu0 %v386
    %395 = vmatprep.subr.bf16.mxu0 0
    %396 = vmatpush1.bf16.msra.mxu0 %v387
    %397 = vmatprep.subr.bf16.mxu0 0
    %398 = vmatpush1.bf16.msra.mxu0 0
    %399 = vmatprep.subr.bf16.mxu0 0
    %400 = vmatpush1.bf16.msra.mxu0 0
    %401 = vmatprep.subr.bf16.mxu0 0
    %402 = vmatpush1.bf16.msra.mxu0 0
    %403 = vmatprep.subr.bf16.mxu0 0
    %404 = vmatpush1.bf16.msra.mxu0 0
    %405 = vmatprep.subr.bf16.mxu0 0
    %406 = vmatpush1.bf16.msra.mxu0 0
    %407 = vmatprep.subr.bf16.mxu0 0
    %408 = vmatpush1.bf16.msra.mxu0 0
    %409 = vmatprep.subr.bf16.mxu0 0
    %410 = vmatpush1.bf16.msra.mxu0 0
    %411 = vmatprep.subr.bf16.mxu0 0
    %412 = vmatpush1.bf16.msra.mxu0 0
    %413 = vmatprep.subr.bf16.mxu0 0
    %414 = vmatpush1.bf16.msra.mxu0 0
    %415 = vmatprep.subr.bf16.mxu0 0
    %416 = vmatpush1.bf16.msra.mxu0 0
    %417 = vmatprep.subr.bf16.mxu0 0
    %418 = vmatpush1.bf16.msra.mxu0 0
    %419 = vmatprep.subr.bf16.mxu0 0
    %420 = vmatpush1.bf16.msra.mxu0 0
    %421 = vmatprep.subr.bf16.mxu0 0
    %422 = vmatpush1.bf16.msra.mxu0 0
    %423 = vmatprep.subr.bf16.mxu0 0
    %424 = vmatpush1.bf16.msra.mxu0 0
    %425 = vmatprep.mubr.bf16.mxu0 0
    %426 = vmatmul.mubr.bf16.gmra.mrb[0].mxu0 %v391
    %v427 = vpop.f32.mrb[0].mxu0
    %v428 = vadd.f32 %v376, %v427
    %v429 = vpop.f32.mrb[0].mxu0
    %v430 = vpop.f32.mrb[0].mxu0
    %v431 = vpop.f32.mrb[0].mxu0
    %432 = vdwg.mxu0
    %v433 = vmax.f32 %v428, 0.0
    %v434 = vpack.c.bf16 %v433, %v433
    %v435 = vld [vmem:[%s8] sm:$0xf]
    %v436 = vld [vmem:[%s8 + $0x4] sm:$0xf]
    %v437 = vld [vmem:[%s8 + $0x8] sm:$0xf]
    %v438 = vld [vmem:[%s8 + $0xc] sm:$0xf]
    %v439 = vld [vmem:[%s14] sm:$0x1]
    %v441 = vlaneseq
    %v442 = vshrl.u32 %v441, 7
    %v443 = vsub.s32 0, %v442
    %v444 = vrot.slane %v439, %v443
    %v450 = vunpack.c.l.b16 %v435
    %v451 = vunpack.c.l.b16 %v436
    %v452 = vunpack.c.l.b16 %v437
    %v453 = vunpack.c.l.b16 %v438
    %v454 = vpack.c.b16 %v451, %v450
    %v455 = vpack.c.b16 %v453, %v452
    %v459 = vsel %vm195, %v434, 0
    %461 = vmatprep.subr.bf16.mxu0 0
    %462 = vmatpush1.bf16.msra.mxu0 %v454
    %463 = vmatprep.subr.bf16.mxu0 0
    %464 = vmatpush1.bf16.msra.mxu0 %v455
    %465 = vmatprep.subr.bf16.mxu0 0
    %466 = vmatpush1.bf16.msra.mxu0 0
    %467 = vmatprep.subr.bf16.mxu0 0
    %468 = vmatpush1.bf16.msra.mxu0 0
    %469 = vmatprep.subr.bf16.mxu0 0
    %470 = vmatpush1.bf16.msra.mxu0 0
    %471 = vmatprep.subr.bf16.mxu0 0
    %472 = vmatpush1.bf16.msra.mxu0 0
    %473 = vmatprep.subr.bf16.mxu0 0
    %474 = vmatpush1.bf16.msra.mxu0 0
    %475 = vmatprep.subr.bf16.mxu0 0
    %476 = vmatpush1.bf16.msra.mxu0 0
    %477 = vmatprep.subr.bf16.mxu0 0
    %478 = vmatpush1.bf16.msra.mxu0 0
    %479 = vmatprep.subr.bf16.mxu0 0
    %480 = vmatpush1.bf16.msra.mxu0 0
    %481 = vmatprep.subr.bf16.mxu0 0
    %482 = vmatpush1.bf16.msra.mxu0 0
    %483 = vmatprep.subr.bf16.mxu0 0
    %484 = vmatpush1.bf16.msra.mxu0 0
    %485 = vmatprep.subr.bf16.mxu0 0
    %486 = vmatpush1.bf16.msra.mxu0 0
    %487 = vmatprep.subr.bf16.mxu0 0
    %488 = vmatpush1.bf16.msra.mxu0 0
    %489 = vmatprep.subr.bf16.mxu0 0
    %490 = vmatpush1.bf16.msra.mxu0 0
    %491 = vmatprep.subr.bf16.mxu0 0
    %492 = vmatpush1.bf16.msra.mxu0 0
    %493 = vmatprep.mubr.bf16.mxu0 0
    %494 = vmatmul.mubr.bf16.gmra.mrb[0].mxu0 %v459
    %v495 = vpop.f32.mrb[0].mxu0
    %v496 = vadd.f32 %v444, %v495
    %v497 = vpop.f32.mrb[0].mxu0
    %v498 = vpop.f32.mrb[0].mxu0
    %v499 = vpop.f32.mrb[0].mxu0
    %500 = vdwg.mxu0
    %501 = vst.msk [vmem:[#allocation2] sm:$0xff] %vm71, %v496
    // Predicated region
    $region62: #{tpu_custom_call.1} parent=1 // pred_check
      _
    $region63: #{tpu_custom_call.1} parent=1 // pred_check_branch
      %503 = sbr.rel (0) target = $region65
    $region64: #{tpu_custom_call.1} parent=1 // pred_region
      %s505 = ssub.s32 128, 128
      %506 = vsyncadd [#allocation3], %s505
      %s508 = sshll.u32 [#allocation2], 4
      %s509 = int_to_ptr.vmem [resolvable:$true] %s508
      %511 = dma.vmem_to_hbm [thread:$0]  %s509, 128, %s15, [#allocation3]
    $region65: #{tpu_custom_call.1} parent=1 // pred_fallthru
      _
    // Predicated region
    $region66: #{tpu_custom_call.1} parent=1 // pred_check
      _
    $region67: #{tpu_custom_call.1} parent=1 // pred_check_branch
      %513 = sbr.rel (0) target = $region69
    $region68: #{tpu_custom_call.1} parent=1 // pred_region
      %514 = dma.done [#allocation3], 128
    $region69: #{tpu_custom_call.1} parent=1 // pred_fallthru
      _
    %515 = vsyncpa [#allocation3], 1

</llo_original>
